<compile_context>
chip_gen: v6e
topology: v6e:2x2x1
jax: 0.10.0
libtpu: 0.0.40
codegen_flags: <defaults>
</compile_context>

<pallas_src>
import jax
import jax.numpy as jnp
from jax import lax
from jax.experimental import pallas as pl
from jax.experimental.pallas import tpu as pltpu

# ---- static geometry -------------------------------------------------------
IN_H = 11
IN_W = 11
PITCH = IN_W                 # lane index k = i*PITCH + j
W_IN    = IN_H * IN_W        # 121
W_CONV1 = 109                # covers valid k up to 9*11+9 = 108 ; 12+109 = 121
W_POOL1 = 97                 # covers valid k up to 8*11+8 =  96 ; 12+97  = 109
W_CONV2 = 85                 # covers valid k up to 7*11+7 =  84 ; 12+85  =  97
W_POOL2 = 73                 # covers valid k up to 6*11+6 =  72 ; 12+73  =  85
LANE_FC = W_POOL2            # fc weight row width (pitch-11 grid, zeros elsewhere)

# Packed scalar-parameter layout (SMEM, float32):
IDX_W1 = 0      # 4 values : conv1 2x2 kernel, row-major (index 2*kh + kw)
IDX_B1 = 4      # 1 value  : conv1 bias
IDX_W2 = 5      # 4 values : conv2 2x2 kernel, row-major
IDX_B2 = 9      # 1 value  : conv2 bias
IDX_BFC = 10    # 2 values : fc1 bias

B_BLK = 1024    # batch rows per grid step (sweepable; >= 2 blocks uses both v7x TCs)
SUB = 128       # sublane sub-chunk processed per inner loop iteration
assert B_BLK % SUB == 0


def cnn_forward_kernel(p_ref, w_ref, x_ref, out_ref):
    wl = w_ref[...]                                   # (2, LANE_FC) fc weights on lanes
    nsub = x_ref.shape[0] // SUB                      # static

    def conv2x2(src, width, w_idx, b_idx):
        # Valid output lane k = i*11+j; taps at k + kh*11 + kw (cross-correlation,
        # matching nn.Conv2d).  Lane-offset slices ride the XLU; MACs on the VPU.
        acc = p_ref[b_idx] + src[:, 0:width] * p_ref[w_idx + 0]
        acc = acc + src[:, 1:width + 1] * p_ref[w_idx + 1]
        acc = acc + src[:, PITCH:width + PITCH] * p_ref[w_idx + 2]
        acc = acc + src[:, PITCH + 1:width + PITCH + 1] * p_ref[w_idx + 3]
        return jnp.maximum(acc, 0.0)                  # fused relu

    def pool2x2(src, width):                          # 2x2 max, stride 1
        return jnp.maximum(
            jnp.maximum(src[:, 0:width], src[:, 1:width + 1]),
            jnp.maximum(src[:, PITCH:width + PITCH],
                        src[:, PITCH + 1:width + PITCH + 1]))

    def chunk(s, carry):
        r0 = pl.multiple_of(s * SUB, SUB)
        x = x_ref[pl.ds(r0, SUB), :]                  # (SUB, 121) f32

        a1 = conv2x2(x, W_CONV1, IDX_W1, IDX_B1)      # valid 10x10 on pitch-11 lanes
        p1 = pool2x2(a1, W_POOL1)                     # valid 9x9
        a2 = conv2x2(p1, W_CONV2, IDX_W2, IDX_B2)     # valid 8x8
        p2 = pool2x2(a2, W_POOL2)                     # valid 7x7, width 73

        # FC(49 -> 2): slab multiply + cross-lane (XLU) reduction.  Weight rows
        # are zero at every non-(i*11+j, i,j<7) lane, so garbage lanes vanish.
        outs = []
        for o in range(2):
            prod = p2 * wl[o:o + 1, :]                             # (SUB, 73)
            outs.append(jnp.sum(prod, axis=1, keepdims=True)
                        + p_ref[IDX_BFC + o])                      # (SUB, 1)
        out_ref[pl.ds(r0, SUB), :] = jnp.concatenate(outs, axis=1)  # single store
        return carry

    lax.fori_loop(0, nsub, chunk, 0)


def pack_scalar_params(params):
    """Pack conv weights/biases + fc bias into one tiny (12,) f32 SMEM vector."""
    w1, b1, w2, b2, _, bfc = params
    return jnp.concatenate([
        w1.reshape(-1), b1.reshape(-1),
        w2.reshape(-1), b2.reshape(-1),
        bfc.reshape(-1),
    ]).astype(jnp.float32)


def make_fc_lane_weights(wfc):
    """Scatter fc1 weight (2, 49) onto the pitch-11 lane grid: wl[o, i*11+j] = wfc[o, i*7+j]."""
    w = wfc.astype(jnp.float32).reshape(2, 7, 7)
    w = jnp.pad(w, ((0, 0), (0, 0), (0, PITCH - 7)))      # (2, 7, 11), zeros at j>=7
    return w.reshape(2, 7 * PITCH)[:, :LANE_FC]            # (2, 73)


@jax.jit
def cnn_forward(x_nchw, params):
    B = x_nchw.shape[0]
    p_vec = pack_scalar_params(params)
    wl = make_fc_lane_weights(params[4])

    # Free reshape (row-major, no transpose, no extra HBM pass): (B,1,11,11) -> (B,121)
    x = x_nchw.reshape(B, W_IN).astype(jnp.float32)
    n_blk = pl.cdiv(B, B_BLK)
    Bp = n_blk * B_BLK
    if Bp != B:
        x = jnp.pad(x, ((0, Bp - B), (0, 0)))

    out = pl.pallas_call(
        cnn_forward_kernel,
        out_shape=jax.ShapeDtypeStruct((Bp, 2), jnp.float32),
        grid=(n_blk,),
        in_specs=[
            # Packed conv/bias scalars: whole vector resident in SMEM.
            pl.BlockSpec(memory_space=pltpu.MemorySpace.SMEM),
            # FC lane-weights: tiny full-array VMEM tile, same block every step.
            pl.BlockSpec((2, LANE_FC), lambda i: (0, 0)),
            # Input slab: one contiguous (B_BLK, 121) batch block per grid step.
            pl.BlockSpec((B_BLK, W_IN), lambda i: (i, 0)),
        ],
        out_specs=pl.BlockSpec((B_BLK, 2), lambda i: (i, 0)),
        compiler_params=pltpu.CompilerParams(
            dimension_semantics=("parallel",)),       # shards batch blocks on v7x's 2 TCs
        cost_estimate=pl.CostEstimate(
            flops=2200 * Bp, transcendentals=0, bytes_accessed=492 * Bp),
    )(p_vec, wl, x)

    return out[:B]                                    # (B, 2), torch API order


def init_params(key):
    """Deterministic parameter init mimicking PyTorch's uniform fan-in bounds."""
    k1, k2, k3, k4, k5, k6 = jax.random.split(key, 6)
    bc = 1.0 / 2.0                         # conv: 1/sqrt(in_c * kh * kw) = 1/sqrt(4)
    w1 = jax.random.uniform(k1, (2, 2), jnp.float32, -bc, bc)
    b1 = jax.random.uniform(k2, (1,), jnp.float32, -bc, bc)
    w2 = jax.random.uniform(k3, (2, 2), jnp.float32, -bc, bc)
    b2 = jax.random.uniform(k4, (1,), jnp.float32, -bc, bc)
    bf = 1.0 / jnp.sqrt(49.0)              # fc1: 1/sqrt(in_features)
    wfc = jax.random.uniform(k5, (2, 49), jnp.float32, -bf, bf)    # torch (out, in)
    bfc = jax.random.uniform(k6, (2,), jnp.float32, -bf, bf)
    return (w1, b1, w2, b2, wfc, bfc)


def reference_forward(x_nchw, params):
    """Independent pure-JAX reference (lax conv / reduce_window), NCHW."""
    w1, b1, w2, b2, wfc, bfc = params
    dn = ('NCHW', 'OIHW', 'NCHW')
    hp = jax.lax.Precision.HIGHEST
    z1 = jax.lax.conv_general_dilated(x_nchw, w1.reshape(1, 1, 2, 2), (1, 1),
                                      'VALID', dimension_numbers=dn,
                                      precision=hp) + b1[0]
    a1 = jnp.maximum(z1, 0.0)
    p1 = jax.lax.reduce_window(a1, -jnp.inf, jax.lax.max,
                               (1, 1, 2, 2), (1, 1, 1, 1), 'VALID')
    z2 = jax.lax.conv_general_dilated(p1, w2.reshape(1, 1, 2, 2), (1, 1),
                                      'VALID', dimension_numbers=dn,
                                      precision=hp) + b2[0]
    a2 = jnp.maximum(z2, 0.0)
    p2 = jax.lax.reduce_window(a2, -jnp.inf, jax.lax.max,
                               (1, 1, 2, 2), (1, 1, 1, 1), 'VALID')
    flat = p2.reshape(x_nchw.shape[0], -1)
    return jnp.dot(flat, wfc.T, precision=hp) + bfc


if __name__ == "__main__":
    key = jax.random.PRNGKey(0)
    kx, kp = jax.random.split(key)
    # Linear(out2*7*7, 2) implies 11x11 spatial input (11 -> 10 -> 9 -> 8 -> 7).
    # B = 2 * B_BLK -> two grid steps, so both v7x TensorCores get a block.
    B = 2 * B_BLK
    x = jax.random.normal(kx, (B, 1, IN_H, IN_W), jnp.float32)
    params = init_params(kp)

    out = jax.block_until_ready(cnn_forward(x, params))
    ref = reference_forward(x, params)

    assert out.shape == (B, 2), out.shape
    assert jnp.allclose(out, ref, rtol=1e-5, atol=1e-5), (out, ref)
    print("KERNEL_OK")
</pallas_src>

<mosaic_0001>
module attributes {stable_mosaic.version = 11 : i64} {
  func.func @cnn_forward_kernel(%arg0: i32, %arg1: memref<12xf32, #tpu.memory_space<smem>>, %arg2: memref<2x73xf32, #tpu.memory_space<vmem>>, %arg3: memref<1024x121xf32, #tpu.memory_space<vmem>>, %arg4: memref<1024x2xf32, #tpu.memory_space<vmem>>) attributes {dimension_semantics = [#tpu.dimension_semantics<parallel>], iteration_bounds = array<i64: 2>, scalar_prefetch = 0 : i64, scratch_operands = 0 : i64, tpu.core_type = #tpu.core_type<tc>, window_params = [{transform_indices = @transform_0, window_bounds = array<i64: 12>}, {pipeline_mode = #tpu.pipeline_mode<synchronous>, transform_indices = @transform_1, window_bounds = array<i64: 2, 73>}, {transform_indices = @transform_2, window_bounds = array<i64: 1024, 121>}, {transform_indices = @transform_3, window_bounds = array<i64: 1024, 2>}]} {
    %c0 = arith.constant 0 : index
    %c0_0 = arith.constant 0 : index
    %0 = vector.load %arg2[%c0, %c0_0] : memref<2x73xf32, #tpu.memory_space<vmem>>, vector<2x73xf32>
    %c0_i32 = arith.constant 0 : i32
    %c8_i32 = arith.constant 8 : i32
    %1 = arith.addi %c0_i32, %c8_i32 : i32
    %c1_i32 = arith.constant 1 : i32
    scf.for %arg5 = %c0_i32 to %1 step %c1_i32  : i32 {
      %c128_i32 = arith.constant 128 : i32
      %2 = arith.muli %arg5, %c128_i32 : i32
      %3 = tpu.assume_multiple %2, 128 : i32
      %4 = arith.index_cast %3 : i32 to index
      %c0_2 = arith.constant 0 : index
      %5 = vector.load %arg3[%4, %c0_2] : memref<1024x121xf32, #tpu.memory_space<vmem>>, vector<128x121xf32>
      %c4 = arith.constant 4 : index
      %6 = memref.load %arg1[%c4] : memref<12xf32, #tpu.memory_space<smem>>
      %7 = vector.extract_strided_slice %5 {offsets = [0, 0], sizes = [128, 109], strides = [1, 1]} : vector<128x121xf32> to vector<128x109xf32>
      %c0_3 = arith.constant 0 : index
      %8 = memref.load %arg1[%c0_3] : memref<12xf32, #tpu.memory_space<smem>>
      %9 = vector.broadcast %8 : f32 to vector<128x109xf32>
      %10 = arith.mulf %7, %9 : vector<128x109xf32>
      %11 = vector.broadcast %6 : f32 to vector<128x109xf32>
      %12 = arith.addf %11, %10 : vector<128x109xf32>
      %13 = vector.extract_strided_slice %5 {offsets = [0, 1], sizes = [128, 109], strides = [1, 1]} : vector<128x121xf32> to vector<128x109xf32>
      %c1 = arith.constant 1 : index
      %14 = memref.load %arg1[%c1] : memref<12xf32, #tpu.memory_space<smem>>
      %15 = vector.broadcast %14 : f32 to vector<128x109xf32>
      %16 = arith.mulf %13, %15 : vector<128x109xf32>
      %17 = arith.addf %12, %16 : vector<128x109xf32>
      %18 = vector.extract_strided_slice %5 {offsets = [0, 11], sizes = [128, 109], strides = [1, 1]} : vector<128x121xf32> to vector<128x109xf32>
      %c2 = arith.constant 2 : index
      %19 = memref.load %arg1[%c2] : memref<12xf32, #tpu.memory_space<smem>>
      %20 = vector.broadcast %19 : f32 to vector<128x109xf32>
      %21 = arith.mulf %18, %20 : vector<128x109xf32>
      %22 = arith.addf %17, %21 : vector<128x109xf32>
      %23 = vector.extract_strided_slice %5 {offsets = [0, 12], sizes = [128, 109], strides = [1, 1]} : vector<128x121xf32> to vector<128x109xf32>
      %c3 = arith.constant 3 : index
      %24 = memref.load %arg1[%c3] : memref<12xf32, #tpu.memory_space<smem>>
      %25 = vector.broadcast %24 : f32 to vector<128x109xf32>
      %26 = arith.mulf %23, %25 : vector<128x109xf32>
      %27 = arith.addf %22, %26 : vector<128x109xf32>
      %cst = arith.constant 0.000000e+00 : f32
      %28 = vector.broadcast %cst : f32 to vector<128x109xf32>
      %29 = arith.maximumf %27, %28 : vector<128x109xf32>
      %30 = vector.extract_strided_slice %29 {offsets = [0, 0], sizes = [128, 97], strides = [1, 1]} : vector<128x109xf32> to vector<128x97xf32>
      %31 = vector.extract_strided_slice %29 {offsets = [0, 1], sizes = [128, 97], strides = [1, 1]} : vector<128x109xf32> to vector<128x97xf32>
      %32 = arith.maximumf %30, %31 : vector<128x97xf32>
      %33 = vector.extract_strided_slice %29 {offsets = [0, 11], sizes = [128, 97], strides = [1, 1]} : vector<128x109xf32> to vector<128x97xf32>
      %34 = vector.extract_strided_slice %29 {offsets = [0, 12], sizes = [128, 97], strides = [1, 1]} : vector<128x109xf32> to vector<128x97xf32>
      %35 = arith.maximumf %33, %34 : vector<128x97xf32>
      %36 = arith.maximumf %32, %35 : vector<128x97xf32>
      %c9 = arith.constant 9 : index
      %37 = memref.load %arg1[%c9] : memref<12xf32, #tpu.memory_space<smem>>
      %38 = vector.extract_strided_slice %36 {offsets = [0, 0], sizes = [128, 85], strides = [1, 1]} : vector<128x97xf32> to vector<128x85xf32>
      %c5 = arith.constant 5 : index
      %39 = memref.load %arg1[%c5] : memref<12xf32, #tpu.memory_space<smem>>
      %40 = vector.broadcast %39 : f32 to vector<128x85xf32>
      %41 = arith.mulf %38, %40 : vector<128x85xf32>
      %42 = vector.broadcast %37 : f32 to vector<128x85xf32>
      %43 = arith.addf %42, %41 : vector<128x85xf32>
      %44 = vector.extract_strided_slice %36 {offsets = [0, 1], sizes = [128, 85], strides = [1, 1]} : vector<128x97xf32> to vector<128x85xf32>
      %c6 = arith.constant 6 : index
      %45 = memref.load %arg1[%c6] : memref<12xf32, #tpu.memory_space<smem>>
      %46 = vector.broadcast %45 : f32 to vector<128x85xf32>
      %47 = arith.mulf %44, %46 : vector<128x85xf32>
      %48 = arith.addf %43, %47 : vector<128x85xf32>
      %49 = vector.extract_strided_slice %36 {offsets = [0, 11], sizes = [128, 85], strides = [1, 1]} : vector<128x97xf32> to vector<128x85xf32>
      %c7 = arith.constant 7 : index
      %50 = memref.load %arg1[%c7] : memref<12xf32, #tpu.memory_space<smem>>
      %51 = vector.broadcast %50 : f32 to vector<128x85xf32>
      %52 = arith.mulf %49, %51 : vector<128x85xf32>
      %53 = arith.addf %48, %52 : vector<128x85xf32>
      %54 = vector.extract_strided_slice %36 {offsets = [0, 12], sizes = [128, 85], strides = [1, 1]} : vector<128x97xf32> to vector<128x85xf32>
      %c8 = arith.constant 8 : index
      %55 = memref.load %arg1[%c8] : memref<12xf32, #tpu.memory_space<smem>>
      %56 = vector.broadcast %55 : f32 to vector<128x85xf32>
      %57 = arith.mulf %54, %56 : vector<128x85xf32>
      %58 = arith.addf %53, %57 : vector<128x85xf32>
      %cst_4 = arith.constant 0.000000e+00 : f32
      %59 = vector.broadcast %cst_4 : f32 to vector<128x85xf32>
      %60 = arith.maximumf %58, %59 : vector<128x85xf32>
      %61 = vector.extract_strided_slice %60 {offsets = [0, 0], sizes = [128, 73], strides = [1, 1]} : vector<128x85xf32> to vector<128x73xf32>
      %62 = vector.extract_strided_slice %60 {offsets = [0, 1], sizes = [128, 73], strides = [1, 1]} : vector<128x85xf32> to vector<128x73xf32>
      %63 = arith.maximumf %61, %62 : vector<128x73xf32>
      %64 = vector.extract_strided_slice %60 {offsets = [0, 11], sizes = [128, 73], strides = [1, 1]} : vector<128x85xf32> to vector<128x73xf32>
      %65 = vector.extract_strided_slice %60 {offsets = [0, 12], sizes = [128, 73], strides = [1, 1]} : vector<128x85xf32> to vector<128x73xf32>
      %66 = arith.maximumf %64, %65 : vector<128x73xf32>
      %67 = arith.maximumf %63, %66 : vector<128x73xf32>
      %68 = vector.extract_strided_slice %0 {offsets = [0, 0], sizes = [1, 73], strides = [1, 1]} : vector<2x73xf32> to vector<1x73xf32>
      %69 = vector.broadcast %68 : vector<1x73xf32> to vector<128x73xf32>
      %70 = arith.mulf %67, %69 : vector<128x73xf32>
      %cst_5 = arith.constant dense<0.000000e+00> : vector<128xf32>
      %71 = vector.multi_reduction <add>, %70, %cst_5 [1] : vector<128x73xf32> to vector<128xf32>
      %72 = vector.shape_cast %71 : vector<128xf32> to vector<128x1xf32>
      %c10 = arith.constant 10 : index
      %73 = memref.load %arg1[%c10] : memref<12xf32, #tpu.memory_space<smem>>
      %74 = vector.broadcast %73 : f32 to vector<128x1xf32>
      %75 = arith.addf %72, %74 : vector<128x1xf32>
      %76 = vector.extract_strided_slice %0 {offsets = [1, 0], sizes = [1, 73], strides = [1, 1]} : vector<2x73xf32> to vector<1x73xf32>
      %77 = vector.broadcast %76 : vector<1x73xf32> to vector<128x73xf32>
      %78 = arith.mulf %67, %77 : vector<128x73xf32>
      %cst_6 = arith.constant dense<0.000000e+00> : vector<128xf32>
      %79 = vector.multi_reduction <add>, %78, %cst_6 [1] : vector<128x73xf32> to vector<128xf32>
      %80 = vector.shape_cast %79 : vector<128xf32> to vector<128x1xf32>
      %c11 = arith.constant 11 : index
      %81 = memref.load %arg1[%c11] : memref<12xf32, #tpu.memory_space<smem>>
      %82 = vector.broadcast %81 : f32 to vector<128x1xf32>
      %83 = arith.addf %80, %82 : vector<128x1xf32>
      %84 = tpu.concatenate %75, %83 in 1 : vector<128x1xf32>, vector<128x1xf32> -> vector<128x2xf32>
      %85 = arith.index_cast %3 : i32 to index
      %c0_7 = arith.constant 0 : index
      %86 = vector.load %arg4[%85, %c0_7] : memref<1024x2xf32, #tpu.memory_space<vmem>>, vector<128x2xf32>
      tpu.vector_store %arg4[%85, %c0_7], %84 {strides = array<i32>} : memref<1024x2xf32, #tpu.memory_space<vmem>>, vector<128x2xf32>,
    }
    %c8_i32_1 = arith.constant 8 : i32
    return
  }
  func.func @transform_0(%arg0: i32) -> i32 {
    %c0_i32 = arith.constant 0 : i32
    %c0_i32_0 = arith.constant 0 : i32
    return %c0_i32 : i32
  }
  func.func @transform_1(%arg0: i32) -> (i32, i32) {
    %c0_i32 = arith.constant 0 : i32
    %c0_i32_0 = arith.constant 0 : i32
    %c0_i32_1 = arith.constant 0 : i32
    return %c0_i32, %c0_i32_0 : i32, i32
  }
  func.func @transform_2(%arg0: i32) -> (i32, i32) {
    %c0_i32 = arith.constant 0 : i32
    %c0_i32_0 = arith.constant 0 : i32
    return %arg0, %c0_i32 : i32, i32
  }
  func.func @transform_3(%arg0: i32) -> (i32, i32) {
    %c0_i32 = arith.constant 0 : i32
    %c0_i32_0 = arith.constant 0 : i32
    return %arg0, %c0_i32 : i32, i32
  }
}

</mosaic_0001>

<llo_original>
// kernel: cnn_forward.1
$region0: #{cnn_forward.1}
  #allocation0 [shape = 'u32[]', space=smem, size = 0x4, offset = 0x4, fixed_abs, tag = 'smem constant byte address 0x4 - core index']
  #allocation1 [shape = 'u32[144,128]{1,0:T(1,128)}', space=vmem, size = 0x12000, scoped, tag = 'internal scratch']
  %s0 = inlined_call_operand.vmem [shape: f32[12], index: 0, kind: input, shape index: {}]
  %s1 = inlined_call_operand.vmem [shape: f32[2,73], index: 1, kind: input, shape index: {}]
  %s2 = inlined_call_operand.vmem [shape: f32[2048,121], index: 2, kind: input, shape index: {}]
  %s3 = inlined_call_operand.vmem [shape: f32[2048,2], index: 3, kind: output, shape index: {}]
  %s4 = sld [smem:[#allocation0]]
  $region56: #{cnn_forward.1} parent=0
    _
  %s6 = ssub.s32 1, %s4
  %s7 = scalar_select 0, %s6, %s4
  $region1: #{cnn_forward.1} parent=0
    #allocation2 [shape = 'u8[512]{0}', space=smem, size = 0x200, scoped, tag = 'input window, operand 0, single buffered']
    #allocation3 [shape = 's32[2]{0}', space=sflag, size = 0x8, scoped, tag = 'scoped memory for cnn_forward.1']
    %8 = vsyncpa [#allocation3], 0
    loop: start=0, step=1, limit=4
    $region2: #{cnn_forward.1} parent=1 // loop_pre_header
      _
    $region3: #{cnn_forward.1} parent=1 // loop_header
      %s10 = sphi 0, %s14
      %p11 = scmp.ge.s32.totalorder %s10, 4
      %s18 = sphi 0, %s18
      %s20 = sphi 0, %s18
      %s21 = sphi 0, %s20
      %s35 = sphi 0, %s21
      %s39 = sphi 0, %s39
      %s41 = sphi 0, %s39
      %s42 = sphi 0, %s41
      %s56 = sphi 0, %s42
      %s62 = sphi 0, %s64
      %s65 = sphi 0, %s62
      %s66 = sphi 0, %s65
      %s82 = sphi 0, %s66
      %s88 = sphi 0, %s90
      %s91 = sphi 0, %s88
      %s92 = sphi 0, %s91
      %s108 = sphi 0, %s92
    $region4: #{cnn_forward.1} parent=1 // loop_header_branch
      %13 = sbr.rel (%p11) target = $region8
    $region5: #{cnn_forward.1} parent=1 // loop_body
      %s15 = ssub.s32 %s10, 1
      %s16 = ssub.s32 %s10, 2
      %s17 = sadd.s32 %s10, 1
      %s19 = sadd.s32 %s18, 1
      %p22 = scmp.eq.s32.totalorder %s10, 1
      %p23 = scmp.ne.s32.totalorder %s18, %s20
      %p24 = scmp.eq.s32.totalorder %s10, 0
      %p25 = por %p23, %p24
      %p26 = scmp.ne.s32.totalorder %s18, %s20
      %p27 = scmp.eq.s32.totalorder %s15, 1
      %p28 = por %p26, %p27
      %p29 = scmp.ne.s32.totalorder %s20, %s21
      %p30 = scmp.eq.s32.totalorder %s15, 0
      %p31 = por %p29, %p30
      %p32 = scmp.ne.s32.totalorder %s20, %s21
      %p33 = scmp.eq.s32.totalorder %s16, 1
      %p34 = por %p32, %p33
      %p36 = scmp.ne.s32.totalorder %s21, %s35
      %p37 = scmp.eq.s32.totalorder %s16, 0
      %p38 = por %p36, %p37
      %s40 = sadd.s32 %s39, 1
      %p43 = scmp.eq.s32.totalorder %s10, 1
      %p44 = scmp.ne.s32.totalorder %s39, %s41
      %p45 = scmp.eq.s32.totalorder %s10, 0
      %p46 = por %p44, %p45
      %p47 = scmp.ne.s32.totalorder %s39, %s41
      %p48 = scmp.eq.s32.totalorder %s15, 1
      %p49 = por %p47, %p48
      %p50 = scmp.ne.s32.totalorder %s41, %s42
      %p51 = scmp.eq.s32.totalorder %s15, 0
      %p52 = por %p50, %p51
      %p53 = scmp.ne.s32.totalorder %s41, %s42
      %p54 = scmp.eq.s32.totalorder %s16, 1
      %p55 = por %p53, %p54
      %p57 = scmp.ne.s32.totalorder %s42, %s56
      %p58 = scmp.eq.s32.totalorder %s16, 0
      %p59 = por %p57, %p58
      %s60 = ssub.s32 %s10, %s17
      %p61 = scmp.eq.s32.totalorder %s60, 0
      %s63 = sadd.s32 %s62, 1
      %s64 = scalar_select %p61, %s62, %s63
      %p67 = pneg %p61
      %p68 = scmp.eq.s32.totalorder %s10, 1
      %p69 = por %p67, %p68
      %p70 = scmp.ne.s32.totalorder %s62, %s65
      %p71 = scmp.eq.s32.totalorder %s10, 0
      %p72 = por %p70, %p71
      %p73 = scmp.ne.s32.totalorder %s62, %s65
      %p74 = scmp.eq.s32.totalorder %s15, 1
      %p75 = por %p73, %p74
      %p76 = scmp.ne.s32.totalorder %s65, %s66
      %p77 = scmp.eq.s32.totalorder %s15, 0
      %p78 = por %p76, %p77
      %p79 = scmp.ne.s32.totalorder %s65, %s66
      %p80 = scmp.eq.s32.totalorder %s16, 1
      %p81 = por %p79, %p80
      %p83 = scmp.ne.s32.totalorder %s66, %s82
      %p84 = scmp.eq.s32.totalorder %s16, 0
      %p85 = por %p83, %p84
      %s86 = ssub.s32 %s10, %s17
      %p87 = scmp.eq.s32.totalorder %s86, 0
      %s89 = sadd.s32 %s88, 1
      %s90 = scalar_select %p87, %s88, %s89
      %p93 = pneg %p87
      %p94 = scmp.eq.s32.totalorder %s10, 1
      %p95 = por %p93, %p94
      %p96 = scmp.ne.s32.totalorder %s88, %s91
      %p97 = scmp.eq.s32.totalorder %s10, 0
      %p98 = por %p96, %p97
      %p99 = scmp.ne.s32.totalorder %s88, %s91
      %p100 = scmp.eq.s32.totalorder %s15, 1
      %p101 = por %p99, %p100
      %p102 = scmp.ne.s32.totalorder %s91, %s92
      %p103 = scmp.eq.s32.totalorder %s15, 0
      %p104 = por %p102, %p103
      %p105 = scmp.ne.s32.totalorder %s91, %s92
      %p106 = scmp.eq.s32.totalorder %s16, 1
      %p107 = por %p105, %p106
      %p109 = scmp.ne.s32.totalorder %s92, %s108
      %p110 = scmp.eq.s32.totalorder %s16, 0
      %p111 = por %p109, %p110
      %p112 = scmp.le.s32.totalorder 1, %s10
      %p113 = scmp.lt.s32.totalorder %s10, 3
      %p114 = pnand %p112, %p113
      %p115 = pneg %p114
      // Predicated region
      $region9: #{cnn_forward.1} parent=5 // pred_check
        _
      $region10: #{cnn_forward.1} parent=5 // pred_check_branch
        %117 = sbr.rel (%p114) target = $region12
      $region11: #{cnn_forward.1} parent=5 // pred_region
        %s118 = ssub.s32 %s10, 1
        // Predicated region
        $region13: #{cnn_forward.1} parent=11 // pred_check
          %p119 = pneg %p31
        $region14: #{cnn_forward.1} parent=11 // pred_check_branch
          %121 = sbr.rel (%p119) target = $region16
        $region15: #{cnn_forward.1} parent=11 // pred_region
          %s123 = ssub.s32 16, 16
          %124 = vsyncadd [#allocation3], %s123
          %s126 = sshll.u32 %s0, 4
          %s127 = int_to_ptr.vmem [resolvable:$true] %s126
          %129 = dma.vmem_to_smem %s127, 16, [#allocation2], [#allocation3]
        $region16: #{cnn_forward.1} parent=11 // pred_fallthru
          _
        // Predicated region
        $region17: #{cnn_forward.1} parent=11 // pred_check
          %p130 = pneg %p52
        $region18: #{cnn_forward.1} parent=11 // pred_check_branch
          %132 = sbr.rel (%p130) target = $region20
        $region19: #{cnn_forward.1} parent=11 // pred_region
          _
        $region20: #{cnn_forward.1} parent=11 // pred_fallthru
          _
      $region12: #{cnn_forward.1} parent=5 // pred_fallthru
        _
      %p133 = scmp.lt.s32.totalorder %s10, 2
      // Predicated region
      $region21: #{cnn_forward.1} parent=5 // pred_check
        %p134 = pneg %p133
      $region22: #{cnn_forward.1} parent=5 // pred_check_branch
        %136 = sbr.rel (%p134) target = $region24
      $region23: #{cnn_forward.1} parent=5 // pred_region
        // Predicated region
        $region25: #{cnn_forward.1} parent=23 // pred_check
          %p137 = pneg %p72
        $region26: #{cnn_forward.1} parent=23 // pred_check_branch
          %139 = sbr.rel (%p137) target = $region28
        $region27: #{cnn_forward.1} parent=23 // pred_region
          %s140 = smul.u32 128, %s10
          %p141 = scmp.lt.s32.totalorder %s140, 255
          %s142 = scalar_select %p141, %s140, 255
          %s143 = smul.addr %s142, 8
          %s144 = scalar_lea.vmem %s2, %s143
          %s145 = smul.u32 128, %s10
        $region28: #{cnn_forward.1} parent=23 // pred_fallthru
          _
      $region24: #{cnn_forward.1} parent=5 // pred_fallthru
        _
      %p146 = scmp.le.s32.totalorder 1, %s10
      %p147 = scmp.lt.s32.totalorder %s10, 3
      %p148 = pnand %p146, %p147
      %p149 = pneg %p148
      // Predicated region
      $region29: #{cnn_forward.1} parent=5 // pred_check
        _
      $region30: #{cnn_forward.1} parent=5 // pred_check_branch
        %151 = sbr.rel (%p148) target = $region32
      $region31: #{cnn_forward.1} parent=5 // pred_region
        %s152 = ssub.s32 %s10, 1
        // Predicated region
        $region33: #{cnn_forward.1} parent=31 // pred_check
          %p153 = pneg %p31
        $region34: #{cnn_forward.1} parent=31 // pred_check_branch
          %155 = sbr.rel (%p153) target = $region36
        $region35: #{cnn_forward.1} parent=31 // pred_region
          %156 = dma.done [#allocation3], 16
        $region36: #{cnn_forward.1} parent=31 // pred_fallthru
          _
        %157 = sfence
        %p158 = pneg %p31
        %p159 = pneg %p28
        %p160 = pneg %p52
        %p161 = pneg %p49
        %s162 = smul.u32 128, %s15
        %p163 = scmp.lt.s32.totalorder %s162, 255
        %s164 = scalar_select %p163, %s162, 255
        %s165 = smul.addr %s164, 8
        %s166 = scalar_lea.vmem %s2, %s165
        %p167 = pneg %p78
        %p168 = pneg %p75
        %p169 = pneg %p104
        %p170 = pneg %p101
        %s171 = smul.u32 128, %s15
        %p172 = scmp.lt.s32.totalorder %s171, 255
        %s173 = scalar_select %p172, %s171, 255
        %s174 = smul.addr %s173, 8
        %s175 = scalar_lea.vmem %s3, %s174
        %s176 = smul.u32 128, %s15
        %p177 = scmp.lt.s32.totalorder %s176, 255
        %s178 = scalar_select %p177, %s176, 255
        %s179 = smul.addr %s178, 8
        %s180 = scalar_lea.vmem %s2, %s179
        %s181 = smul.u32 128, %s15
        %s182 = smul.u32 128, %s15
        %p183 = scmp.lt.s32.totalorder %s182, 255
        %s184 = scalar_select %p183, %s182, 255
        %s185 = smul.addr %s184, 8
        %s186 = scalar_lea.vmem %s3, %s185
        %s187 = smul.u32 128, %s15
        %v188 = vld [vmem:[%s1] sm:$0x3]
        loop: start=0, step=1, limit=8
        $region37: #{cnn_forward.1} parent=31 // loop_pre_header
          _
        $region38: #{cnn_forward.1} parent=31 // loop_header
          %s190 = sphi 0, %s194
          %p191 = scmp.ge.s32.totalorder %s190, 8
        $region39: #{cnn_forward.1} parent=31 // loop_header_branch
          %193 = sbr.rel (%p191) target = $region43
        $region40: #{cnn_forward.1} parent=31 // loop_body
          %s195 = smul.u32 %s190, 128
          %s196 = scalar_lea.vmem %s180, %s195
          %v197 = vld [vmem:[%s196] sm:$0xff]
          %v198 = vld [vmem:[%s196 + $0x8] sm:$0xff]
          %v199 = vld [vmem:[%s196 + $0x10] sm:$0xff]
          %v200 = vld [vmem:[%s196 + $0x18] sm:$0xff]
          %v201 = vld [vmem:[%s196 + $0x20] sm:$0xff]
          %v202 = vld [vmem:[%s196 + $0x28] sm:$0xff]
          %v203 = vld [vmem:[%s196 + $0x30] sm:$0xff]
          %v204 = vld [vmem:[%s196 + $0x38] sm:$0xff]
          %v205 = vld [vmem:[%s196 + $0x40] sm:$0xff]
          %v206 = vld [vmem:[%s196 + $0x48] sm:$0xff]
          %v207 = vld [vmem:[%s196 + $0x50] sm:$0xff]
          %v208 = vld [vmem:[%s196 + $0x58] sm:$0xff]
          %v209 = vld [vmem:[%s196 + $0x60] sm:$0xff]
          %v210 = vld [vmem:[%s196 + $0x68] sm:$0xff]
          %v211 = vld [vmem:[%s196 + $0x70] sm:$0xff]
          %v212 = vld [vmem:[%s196 + $0x78] sm:$0xff]
          %s213 = sld [smem:[#allocation2 + $0x4]]
          %s214 = sld [smem:[#allocation2]]
          %v215 = vstv %s214
          %v216 = vmul.f32 %v197, %v215
          %v217 = vmul.f32 %v198, %v215
          %v218 = vmul.f32 %v199, %v215
          %v219 = vmul.f32 %v200, %v215
          %v220 = vmul.f32 %v201, %v215
          %v221 = vmul.f32 %v202, %v215
          %v222 = vmul.f32 %v203, %v215
          %v223 = vmul.f32 %v204, %v215
          %v224 = vmul.f32 %v205, %v215
          %v225 = vmul.f32 %v206, %v215
          %v226 = vmul.f32 %v207, %v215
          %v227 = vmul.f32 %v208, %v215
          %v228 = vmul.f32 %v209, %v215
          %v229 = vmul.f32 %v210, %v215
          %v230 = vmul.f32 %v211, %v215
          %v231 = vmul.f32 %v212, %v215
          %v232 = vstv %s213
          %v233 = vadd.f32 %v232, %v216
          %v234 = vadd.f32 %v232, %v217
          %v235 = vadd.f32 %v232, %v218
          %v236 = vadd.f32 %v232, %v219
          %v237 = vadd.f32 %v232, %v220
          %v238 = vadd.f32 %v232, %v221
          %v239 = vadd.f32 %v232, %v222
          %v240 = vadd.f32 %v232, %v223
          %v241 = vadd.f32 %v232, %v224
          %v242 = vadd.f32 %v232, %v225
          %v243 = vadd.f32 %v232, %v226
          %v244 = vadd.f32 %v232, %v227
          %v245 = vadd.f32 %v232, %v228
          %v246 = vadd.f32 %v232, %v229
          %v247 = vadd.f32 %v232, %v230
          %v248 = vadd.f32 %v232, %v231
          %s249 = sld [smem:[#allocation2 + $0x1]]
          %v250 = vstv %s249
          %v251 = vmul.f32 %v197, %v250
          %v252 = vmul.f32 %v198, %v250
          %v253 = vmul.f32 %v199, %v250
          %v254 = vmul.f32 %v200, %v250
          %v255 = vmul.f32 %v201, %v250
          %v256 = vmul.f32 %v202, %v250
          %v257 = vmul.f32 %v203, %v250
          %v258 = vmul.f32 %v204, %v250
          %v259 = vmul.f32 %v205, %v250
          %v260 = vmul.f32 %v206, %v250
          %v261 = vmul.f32 %v207, %v250
          %v262 = vmul.f32 %v208, %v250
          %v263 = vmul.f32 %v209, %v250
          %v264 = vmul.f32 %v210, %v250
          %v265 = vmul.f32 %v211, %v250
          %v266 = vmul.f32 %v212, %v250
          %283 = vrot.lane.b32.xlu0 %v251, 127
          %v284 = vpop.permute.xlu0 %283
          %285 = vrot.lane.b32.xlu0 %v252, 127
          %v286 = vpop.permute.xlu0 %285
          %287 = vrot.lane.b32.xlu0 %v253, 127
          %v288 = vpop.permute.xlu0 %287
          %289 = vrot.lane.b32.xlu0 %v254, 127
          %v290 = vpop.permute.xlu0 %289
          %291 = vrot.lane.b32.xlu0 %v255, 127
          %v292 = vpop.permute.xlu0 %291
          %293 = vrot.lane.b32.xlu0 %v256, 127
          %v294 = vpop.permute.xlu0 %293
          %295 = vrot.lane.b32.xlu0 %v257, 127
          %v296 = vpop.permute.xlu0 %295
          %297 = vrot.lane.b32.xlu0 %v258, 127
          %v298 = vpop.permute.xlu0 %297
          %299 = vrot.lane.b32.xlu0 %v259, 127
          %v300 = vpop.permute.xlu0 %299
          %301 = vrot.lane.b32.xlu0 %v260, 127
          %v302 = vpop.permute.xlu0 %301
          %303 = vrot.lane.b32.xlu0 %v261, 127
          %v304 = vpop.permute.xlu0 %303
          %305 = vrot.lane.b32.xlu0 %v262, 127
          %v306 = vpop.permute.xlu0 %305
          %307 = vrot.lane.b32.xlu0 %v263, 127
          %v308 = vpop.permute.xlu0 %307
          %309 = vrot.lane.b32.xlu0 %v264, 127
          %v310 = vpop.permute.xlu0 %309
          %311 = vrot.lane.b32.xlu0 %v265, 127
          %v312 = vpop.permute.xlu0 %311
          %313 = vrot.lane.b32.xlu0 %v266, 127
          %v314 = vpop.permute.xlu0 %313
          %v331 = vadd.f32 %v233, %v284
          %v332 = vadd.f32 %v234, %v286
          %v333 = vadd.f32 %v235, %v288
          %v334 = vadd.f32 %v236, %v290
          %v335 = vadd.f32 %v237, %v292
          %v336 = vadd.f32 %v238, %v294
          %v337 = vadd.f32 %v239, %v296
          %v338 = vadd.f32 %v240, %v298
          %v339 = vadd.f32 %v241, %v300
          %v340 = vadd.f32 %v242, %v302
          %v341 = vadd.f32 %v243, %v304
          %v342 = vadd.f32 %v244, %v306
          %v343 = vadd.f32 %v245, %v308
          %v344 = vadd.f32 %v246, %v310
          %v345 = vadd.f32 %v247, %v312
          %v346 = vadd.f32 %v248, %v314
          %s347 = sld [smem:[#allocation2 + $0x2]]
          %v348 = vstv %s347
          %v349 = vmul.f32 %v197, %v348
          %v350 = vmul.f32 %v198, %v348
          %v351 = vmul.f32 %v199, %v348
          %v352 = vmul.f32 %v200, %v348
          %v353 = vmul.f32 %v201, %v348
          %v354 = vmul.f32 %v202, %v348
          %v355 = vmul.f32 %v203, %v348
          %v356 = vmul.f32 %v204, %v348
          %v357 = vmul.f32 %v205, %v348
          %v358 = vmul.f32 %v206, %v348
          %v359 = vmul.f32 %v207, %v348
          %v360 = vmul.f32 %v208, %v348
          %v361 = vmul.f32 %v209, %v348
          %v362 = vmul.f32 %v210, %v348
          %v363 = vmul.f32 %v211, %v348
          %v364 = vmul.f32 %v212, %v348
          %381 = vrot.lane.b32.xlu0 %v349, 117
          %v382 = vpop.permute.xlu0 %381
          %383 = vrot.lane.b32.xlu0 %v350, 117
          %v384 = vpop.permute.xlu0 %383
          %385 = vrot.lane.b32.xlu0 %v351, 117
          %v386 = vpop.permute.xlu0 %385
          %387 = vrot.lane.b32.xlu0 %v352, 117
          %v388 = vpop.permute.xlu0 %387
          %389 = vrot.lane.b32.xlu0 %v353, 117
          %v390 = vpop.permute.xlu0 %389
          %391 = vrot.lane.b32.xlu0 %v354, 117
          %v392 = vpop.permute.xlu0 %391
          %393 = vrot.lane.b32.xlu0 %v355, 117
          %v394 = vpop.permute.xlu0 %393
          %395 = vrot.lane.b32.xlu0 %v356, 117
          %v396 = vpop.permute.xlu0 %395
          %397 = vrot.lane.b32.xlu0 %v357, 117
          %v398 = vpop.permute.xlu0 %397
          %399 = vrot.lane.b32.xlu0 %v358, 117
          %v400 = vpop.permute.xlu0 %399
          %401 = vrot.lane.b32.xlu0 %v359, 117
          %v402 = vpop.permute.xlu0 %401
          %403 = vrot.lane.b32.xlu0 %v360, 117
          %v404 = vpop.permute.xlu0 %403
          %405 = vrot.lane.b32.xlu0 %v361, 117
          %v406 = vpop.permute.xlu0 %405
          %407 = vrot.lane.b32.xlu0 %v362, 117
          %v408 = vpop.permute.xlu0 %407
          %409 = vrot.lane.b32.xlu0 %v363, 117
          %v410 = vpop.permute.xlu0 %409
          %411 = vrot.lane.b32.xlu0 %v364, 117
          %v412 = vpop.permute.xlu0 %411
          %v429 = vadd.f32 %v331, %v382
          %v430 = vadd.f32 %v332, %v384
          %v431 = vadd.f32 %v333, %v386
          %v432 = vadd.f32 %v334, %v388
          %v433 = vadd.f32 %v335, %v390
          %v434 = vadd.f32 %v336, %v392
          %v435 = vadd.f32 %v337, %v394
          %v436 = vadd.f32 %v338, %v396
          %v437 = vadd.f32 %v339, %v398
          %v438 = vadd.f32 %v340, %v400
          %v439 = vadd.f32 %v341, %v402
          %v440 = vadd.f32 %v342, %v404
          %v441 = vadd.f32 %v343, %v406
          %v442 = vadd.f32 %v344, %v408
          %v443 = vadd.f32 %v345, %v410
          %v444 = vadd.f32 %v346, %v412
          %s445 = sld [smem:[#allocation2 + $0x3]]
          %v446 = vstv %s445
          %v447 = vmul.f32 %v197, %v446
          %v448 = vmul.f32 %v198, %v446
          %v449 = vmul.f32 %v199, %v446
          %v450 = vmul.f32 %v200, %v446
          %v451 = vmul.f32 %v201, %v446
          %v452 = vmul.f32 %v202, %v446
          %v453 = vmul.f32 %v203, %v446
          %v454 = vmul.f32 %v204, %v446
          %v455 = vmul.f32 %v205, %v446
          %v456 = vmul.f32 %v206, %v446
          %v457 = vmul.f32 %v207, %v446
          %v458 = vmul.f32 %v208, %v446
          %v459 = vmul.f32 %v209, %v446
          %v460 = vmul.f32 %v210, %v446
          %v461 = vmul.f32 %v211, %v446
          %v462 = vmul.f32 %v212, %v446
          %479 = vrot.lane.b32.xlu0 %v447, 116
          %v480 = vpop.permute.xlu0 %479
          %481 = vrot.lane.b32.xlu0 %v448, 116
          %v482 = vpop.permute.xlu0 %481
          %483 = vrot.lane.b32.xlu0 %v449, 116
          %v484 = vpop.permute.xlu0 %483
          %485 = vrot.lane.b32.xlu0 %v450, 116
          %v486 = vpop.permute.xlu0 %485
          %487 = vrot.lane.b32.xlu0 %v451, 116
          %v488 = vpop.permute.xlu0 %487
          %489 = vrot.lane.b32.xlu0 %v452, 116
          %v490 = vpop.permute.xlu0 %489
          %491 = vrot.lane.b32.xlu0 %v453, 116
          %v492 = vpop.permute.xlu0 %491
          %493 = vrot.lane.b32.xlu0 %v454, 116
          %v494 = vpop.permute.xlu0 %493
          %495 = vrot.lane.b32.xlu0 %v455, 116
          %v496 = vpop.permute.xlu0 %495
          %497 = vrot.lane.b32.xlu0 %v456, 116
          %v498 = vpop.permute.xlu0 %497
          %499 = vrot.lane.b32.xlu0 %v457, 116
          %v500 = vpop.permute.xlu0 %499
          %501 = vrot.lane.b32.xlu0 %v458, 116
          %v502 = vpop.permute.xlu0 %501
          %503 = vrot.lane.b32.xlu0 %v459, 116
          %v504 = vpop.permute.xlu0 %503
          %505 = vrot.lane.b32.xlu0 %v460, 116
          %v506 = vpop.permute.xlu0 %505
          %507 = vrot.lane.b32.xlu0 %v461, 116
          %v508 = vpop.permute.xlu0 %507
          %509 = vrot.lane.b32.xlu0 %v462, 116
          %v510 = vpop.permute.xlu0 %509
          %v527 = vadd.f32 %v429, %v480
          %v528 = vadd.f32 %v430, %v482
          %v529 = vadd.f32 %v431, %v484
          %v530 = vadd.f32 %v432, %v486
          %v531 = vadd.f32 %v433, %v488
          %v532 = vadd.f32 %v434, %v490
          %v533 = vadd.f32 %v435, %v492
          %v534 = vadd.f32 %v436, %v494
          %v535 = vadd.f32 %v437, %v496
          %v536 = vadd.f32 %v438, %v498
          %v537 = vadd.f32 %v439, %v500
          %v538 = vadd.f32 %v440, %v502
          %v539 = vadd.f32 %v441, %v504
          %v540 = vadd.f32 %v442, %v506
          %v541 = vadd.f32 %v443, %v508
          %v542 = vadd.f32 %v444, %v510
          %v543 = vmax.f32 %v527, 0.0
          %v544 = vmax.f32 %v528, 0.0
          %v545 = vmax.f32 %v529, 0.0
          %v546 = vmax.f32 %v530, 0.0
          %v547 = vmax.f32 %v531, 0.0
          %v548 = vmax.f32 %v532, 0.0
          %v549 = vmax.f32 %v533, 0.0
          %v550 = vmax.f32 %v534, 0.0
          %v551 = vmax.f32 %v535, 0.0
          %v552 = vmax.f32 %v536, 0.0
          %v553 = vmax.f32 %v537, 0.0
          %v554 = vmax.f32 %v538, 0.0
          %v555 = vmax.f32 %v539, 0.0
          %v556 = vmax.f32 %v540, 0.0
          %v557 = vmax.f32 %v541, 0.0
          %v558 = vmax.f32 %v542, 0.0
          %575 = vrot.lane.b32.xlu0 %v543, 127
          %v576 = vpop.permute.xlu0 %575
          %577 = vrot.lane.b32.xlu0 %v544, 127
          %v578 = vpop.permute.xlu0 %577
          %579 = vrot.lane.b32.xlu0 %v545, 127
          %v580 = vpop.permute.xlu0 %579
          %581 = vrot.lane.b32.xlu0 %v546, 127
          %v582 = vpop.permute.xlu0 %581
          %583 = vrot.lane.b32.xlu0 %v547, 127
          %v584 = vpop.permute.xlu0 %583
          %585 = vrot.lane.b32.xlu0 %v548, 127
          %v586 = vpop.permute.xlu0 %585
          %587 = vrot.lane.b32.xlu0 %v549, 127
          %v588 = vpop.permute.xlu0 %587
          %589 = vrot.lane.b32.xlu0 %v550, 127
          %v590 = vpop.permute.xlu0 %589
          %591 = vrot.lane.b32.xlu0 %v551, 127
          %v592 = vpop.permute.xlu0 %591
          %593 = vrot.lane.b32.xlu0 %v552, 127
          %v594 = vpop.permute.xlu0 %593
          %595 = vrot.lane.b32.xlu0 %v553, 127
          %v596 = vpop.permute.xlu0 %595
          %597 = vrot.lane.b32.xlu0 %v554, 127
          %v598 = vpop.permute.xlu0 %597
          %599 = vrot.lane.b32.xlu0 %v555, 127
          %v600 = vpop.permute.xlu0 %599
          %601 = vrot.lane.b32.xlu0 %v556, 127
          %v602 = vpop.permute.xlu0 %601
          %603 = vrot.lane.b32.xlu0 %v557, 127
          %v604 = vpop.permute.xlu0 %603
          %605 = vrot.lane.b32.xlu0 %v558, 127
          %v606 = vpop.permute.xlu0 %605
          %v623 = vmax.f32 %v543, %v576
          %v624 = vmax.f32 %v544, %v578
          %v625 = vmax.f32 %v545, %v580
          %v626 = vmax.f32 %v546, %v582
          %v627 = vmax.f32 %v547, %v584
          %v628 = vmax.f32 %v548, %v586
          %v629 = vmax.f32 %v549, %v588
          %v630 = vmax.f32 %v550, %v590
          %v631 = vmax.f32 %v551, %v592
          %v632 = vmax.f32 %v552, %v594
          %v633 = vmax.f32 %v553, %v596
          %v634 = vmax.f32 %v554, %v598
          %v635 = vmax.f32 %v555, %v600
          %v636 = vmax.f32 %v556, %v602
          %v637 = vmax.f32 %v557, %v604
          %v638 = vmax.f32 %v558, %v606
          %655 = vrot.lane.b32.xlu0 %v623, 117
          %v656 = vpop.permute.xlu0 %655
          %657 = vrot.lane.b32.xlu0 %v624, 117
          %v658 = vpop.permute.xlu0 %657
          %659 = vrot.lane.b32.xlu0 %v625, 117
          %v660 = vpop.permute.xlu0 %659
          %661 = vrot.lane.b32.xlu0 %v626, 117
          %v662 = vpop.permute.xlu0 %661
          %663 = vrot.lane.b32.xlu0 %v627, 117
          %v664 = vpop.permute.xlu0 %663
          %665 = vrot.lane.b32.xlu0 %v628, 117
          %v666 = vpop.permute.xlu0 %665
          %667 = vrot.lane.b32.xlu0 %v629, 117
          %v668 = vpop.permute.xlu0 %667
          %669 = vrot.lane.b32.xlu0 %v630, 117
          %v670 = vpop.permute.xlu0 %669
          %671 = vrot.lane.b32.xlu0 %v631, 117
          %v672 = vpop.permute.xlu0 %671
          %673 = vrot.lane.b32.xlu0 %v632, 117
          %v674 = vpop.permute.xlu0 %673
          %675 = vrot.lane.b32.xlu0 %v633, 117
          %v676 = vpop.permute.xlu0 %675
          %677 = vrot.lane.b32.xlu0 %v634, 117
          %v678 = vpop.permute.xlu0 %677
          %679 = vrot.lane.b32.xlu0 %v635, 117
          %v680 = vpop.permute.xlu0 %679
          %681 = vrot.lane.b32.xlu0 %v636, 117
          %v682 = vpop.permute.xlu0 %681
          %683 = vrot.lane.b32.xlu0 %v637, 117
          %v684 = vpop.permute.xlu0 %683
          %685 = vrot.lane.b32.xlu0 %v638, 117
          %v686 = vpop.permute.xlu0 %685
          %v703 = vmax.f32 %v623, %v656
          %v704 = vmax.f32 %v624, %v658
          %v705 = vmax.f32 %v625, %v660
          %v706 = vmax.f32 %v626, %v662
          %v707 = vmax.f32 %v627, %v664
          %v708 = vmax.f32 %v628, %v666
          %v709 = vmax.f32 %v629, %v668
          %v710 = vmax.f32 %v630, %v670
          %v711 = vmax.f32 %v631, %v672
          %v712 = vmax.f32 %v632, %v674
          %v713 = vmax.f32 %v633, %v676
          %v714 = vmax.f32 %v634, %v678
          %v715 = vmax.f32 %v635, %v680
          %v716 = vmax.f32 %v636, %v682
          %v717 = vmax.f32 %v637, %v684
          %v718 = vmax.f32 %v638, %v686
          %s719 = sld [smem:[#allocation2 + $0x9]]
          %s720 = sld [smem:[#allocation2 + $0x5]]
          %v721 = vstv %s720
          %v722 = vmul.f32 %v703, %v721
          %v723 = vmul.f32 %v704, %v721
          %v724 = vmul.f32 %v705, %v721
          %v725 = vmul.f32 %v706, %v721
          %v726 = vmul.f32 %v707, %v721
          %v727 = vmul.f32 %v708, %v721
          %v728 = vmul.f32 %v709, %v721
          %v729 = vmul.f32 %v710, %v721
          %v730 = vmul.f32 %v711, %v721
          %v731 = vmul.f32 %v712, %v721
          %v732 = vmul.f32 %v713, %v721
          %v733 = vmul.f32 %v714, %v721
          %v734 = vmul.f32 %v715, %v721
          %v735 = vmul.f32 %v716, %v721
          %v736 = vmul.f32 %v717, %v721
          %v737 = vmul.f32 %v718, %v721
          %v738 = vstv %s719
          %v739 = vadd.f32 %v738, %v722
          %v740 = vadd.f32 %v738, %v723
          %v741 = vadd.f32 %v738, %v724
          %v742 = vadd.f32 %v738, %v725
          %v743 = vadd.f32 %v738, %v726
          %v744 = vadd.f32 %v738, %v727
          %v745 = vadd.f32 %v738, %v728
          %v746 = vadd.f32 %v738, %v729
          %v747 = vadd.f32 %v738, %v730
          %v748 = vadd.f32 %v738, %v731
          %v749 = vadd.f32 %v738, %v732
          %v750 = vadd.f32 %v738, %v733
          %v751 = vadd.f32 %v738, %v734
          %v752 = vadd.f32 %v738, %v735
          %v753 = vadd.f32 %v738, %v736
          %v754 = vadd.f32 %v738, %v737
          %s755 = sld [smem:[#allocation2 + $0x6]]
          %v756 = vstv %s755
          %v757 = vmul.f32 %v703, %v756
          %v758 = vmul.f32 %v704, %v756
          %v759 = vmul.f32 %v705, %v756
          %v760 = vmul.f32 %v706, %v756
          %v761 = vmul.f32 %v707, %v756
          %v762 = vmul.f32 %v708, %v756
          %v763 = vmul.f32 %v709, %v756
          %v764 = vmul.f32 %v710, %v756
          %v765 = vmul.f32 %v711, %v756
          %v766 = vmul.f32 %v712, %v756
          %v767 = vmul.f32 %v713, %v756
          %v768 = vmul.f32 %v714, %v756
          %v769 = vmul.f32 %v715, %v756
          %v770 = vmul.f32 %v716, %v756
          %v771 = vmul.f32 %v717, %v756
          %v772 = vmul.f32 %v718, %v756
          %789 = vrot.lane.b32.xlu0 %v757, 127
          %v790 = vpop.permute.xlu0 %789
          %791 = vrot.lane.b32.xlu0 %v758, 127
          %v792 = vpop.permute.xlu0 %791
          %793 = vrot.lane.b32.xlu0 %v759, 127
          %v794 = vpop.permute.xlu0 %793
          %795 = vrot.lane.b32.xlu0 %v760, 127
          %v796 = vpop.permute.xlu0 %795
          %797 = vrot.lane.b32.xlu0 %v761, 127
          %v798 = vpop.permute.xlu0 %797
          %799 = vrot.lane.b32.xlu0 %v762, 127
          %v800 = vpop.permute.xlu0 %799
          %801 = vrot.lane.b32.xlu0 %v763, 127
          %v802 = vpop.permute.xlu0 %801
          %803 = vrot.lane.b32.xlu0 %v764, 127
          %v804 = vpop.permute.xlu0 %803
          %805 = vrot.lane.b32.xlu0 %v765, 127
          %v806 = vpop.permute.xlu0 %805
          %807 = vrot.lane.b32.xlu0 %v766, 127
          %v808 = vpop.permute.xlu0 %807
          %809 = vrot.lane.b32.xlu0 %v767, 127
          %v810 = vpop.permute.xlu0 %809
          %811 = vrot.lane.b32.xlu0 %v768, 127
          %v812 = vpop.permute.xlu0 %811
          %813 = vrot.lane.b32.xlu0 %v769, 127
          %v814 = vpop.permute.xlu0 %813
          %815 = vrot.lane.b32.xlu0 %v770, 127
          %v816 = vpop.permute.xlu0 %815
          %817 = vrot.lane.b32.xlu0 %v771, 127
          %v818 = vpop.permute.xlu0 %817
          %819 = vrot.lane.b32.xlu0 %v772, 127
          %v820 = vpop.permute.xlu0 %819
          %v837 = vadd.f32 %v739, %v790
          %v838 = vadd.f32 %v740, %v792
          %v839 = vadd.f32 %v741, %v794
          %v840 = vadd.f32 %v742, %v796
          %v841 = vadd.f32 %v743, %v798
          %v842 = vadd.f32 %v744, %v800
          %v843 = vadd.f32 %v745, %v802
          %v844 = vadd.f32 %v746, %v804
          %v845 = vadd.f32 %v747, %v806
          %v846 = vadd.f32 %v748, %v808
          %v847 = vadd.f32 %v749, %v810
          %v848 = vadd.f32 %v750, %v812
          %v849 = vadd.f32 %v751, %v814
          %v850 = vadd.f32 %v752, %v816
          %v851 = vadd.f32 %v753, %v818
          %v852 = vadd.f32 %v754, %v820
          %s853 = sld [smem:[#allocation2 + $0x7]]
          %v854 = vstv %s853
          %v855 = vmul.f32 %v703, %v854
          %v856 = vmul.f32 %v704, %v854
          %v857 = vmul.f32 %v705, %v854
          %v858 = vmul.f32 %v706, %v854
          %v859 = vmul.f32 %v707, %v854
          %v860 = vmul.f32 %v708, %v854
          %v861 = vmul.f32 %v709, %v854
          %v862 = vmul.f32 %v710, %v854
          %v863 = vmul.f32 %v711, %v854
          %v864 = vmul.f32 %v712, %v854
          %v865 = vmul.f32 %v713, %v854
          %v866 = vmul.f32 %v714, %v854
          %v867 = vmul.f32 %v715, %v854
          %v868 = vmul.f32 %v716, %v854
          %v869 = vmul.f32 %v717, %v854
          %v870 = vmul.f32 %v718, %v854
          %887 = vrot.lane.b32.xlu0 %v855, 117
          %v888 = vpop.permute.xlu0 %887
          %889 = vrot.lane.b32.xlu0 %v856, 117
          %v890 = vpop.permute.xlu0 %889
          %891 = vrot.lane.b32.xlu0 %v857, 117
          %v892 = vpop.permute.xlu0 %891
          %893 = vrot.lane.b32.xlu0 %v858, 117
          %v894 = vpop.permute.xlu0 %893
          %895 = vrot.lane.b32.xlu0 %v859, 117
          %v896 = vpop.permute.xlu0 %895
          %897 = vrot.lane.b32.xlu0 %v860, 117
          %v898 = vpop.permute.xlu0 %897
          %899 = vrot.lane.b32.xlu0 %v861, 117
          %v900 = vpop.permute.xlu0 %899
          %901 = vrot.lane.b32.xlu0 %v862, 117
          %v902 = vpop.permute.xlu0 %901
          %903 = vrot.lane.b32.xlu0 %v863, 117
          %v904 = vpop.permute.xlu0 %903
          %905 = vrot.lane.b32.xlu0 %v864, 117
          %v906 = vpop.permute.xlu0 %905
          %907 = vrot.lane.b32.xlu0 %v865, 117
          %v908 = vpop.permute.xlu0 %907
          %909 = vrot.lane.b32.xlu0 %v866, 117
          %v910 = vpop.permute.xlu0 %909
          %911 = vrot.lane.b32.xlu0 %v867, 117
          %v912 = vpop.permute.xlu0 %911
          %913 = vrot.lane.b32.xlu0 %v868, 117
          %v914 = vpop.permute.xlu0 %913
          %915 = vrot.lane.b32.xlu0 %v869, 117
          %v916 = vpop.permute.xlu0 %915
          %917 = vrot.lane.b32.xlu0 %v870, 117
          %v918 = vpop.permute.xlu0 %917
          %v935 = vadd.f32 %v837, %v888
          %v936 = vadd.f32 %v838, %v890
          %v937 = vadd.f32 %v839, %v892
          %v938 = vadd.f32 %v840, %v894
          %v939 = vadd.f32 %v841, %v896
          %v940 = vadd.f32 %v842, %v898
          %v941 = vadd.f32 %v843, %v900
          %v942 = vadd.f32 %v844, %v902
          %v943 = vadd.f32 %v845, %v904
          %v944 = vadd.f32 %v846, %v906
          %v945 = vadd.f32 %v847, %v908
          %v946 = vadd.f32 %v848, %v910
          %v947 = vadd.f32 %v849, %v912
          %v948 = vadd.f32 %v850, %v914
          %v949 = vadd.f32 %v851, %v916
          %v950 = vadd.f32 %v852, %v918
          %s951 = sld [smem:[#allocation2 + $0x8]]
          %v952 = vstv %s951
          %v953 = vmul.f32 %v703, %v952
          %v954 = vmul.f32 %v704, %v952
          %v955 = vmul.f32 %v705, %v952
          %v956 = vmul.f32 %v706, %v952
          %v957 = vmul.f32 %v707, %v952
          %v958 = vmul.f32 %v708, %v952
          %v959 = vmul.f32 %v709, %v952
          %v960 = vmul.f32 %v710, %v952
          %v961 = vmul.f32 %v711, %v952
          %v962 = vmul.f32 %v712, %v952
          %v963 = vmul.f32 %v713, %v952
          %v964 = vmul.f32 %v714, %v952
          %v965 = vmul.f32 %v715, %v952
          %v966 = vmul.f32 %v716, %v952
          %v967 = vmul.f32 %v717, %v952
          %v968 = vmul.f32 %v718, %v952
          %985 = vrot.lane.b32.xlu0 %v953, 116
          %v986 = vpop.permute.xlu0 %985
          %987 = vrot.lane.b32.xlu0 %v954, 116
          %v988 = vpop.permute.xlu0 %987
          %989 = vrot.lane.b32.xlu0 %v955, 116
          %v990 = vpop.permute.xlu0 %989
          %991 = vrot.lane.b32.xlu0 %v956, 116
          %v992 = vpop.permute.xlu0 %991
          %993 = vrot.lane.b32.xlu0 %v957, 116
          %v994 = vpop.permute.xlu0 %993
          %995 = vrot.lane.b32.xlu0 %v958, 116
          %v996 = vpop.permute.xlu0 %995
          %997 = vrot.lane.b32.xlu0 %v959, 116
          %v998 = vpop.permute.xlu0 %997
          %999 = vrot.lane.b32.xlu0 %v960, 116
          %v1000 = vpop.permute.xlu0 %999
          %1001 = vrot.lane.b32.xlu0 %v961, 116
          %v1002 = vpop.permute.xlu0 %1001
          %1003 = vrot.lane.b32.xlu0 %v962, 116
          %v1004 = vpop.permute.xlu0 %1003
          %1005 = vrot.lane.b32.xlu0 %v963, 116
          %v1006 = vpop.permute.xlu0 %1005
          %1007 = vrot.lane.b32.xlu0 %v964, 116
          %v1008 = vpop.permute.xlu0 %1007
          %1009 = vrot.lane.b32.xlu0 %v965, 116
          %v1010 = vpop.permute.xlu0 %1009
          %1011 = vrot.lane.b32.xlu0 %v966, 116
          %v1012 = vpop.permute.xlu0 %1011
          %1013 = vrot.lane.b32.xlu0 %v967, 116
          %v1014 = vpop.permute.xlu0 %1013
          %1015 = vrot.lane.b32.xlu0 %v968, 116
          %v1016 = vpop.permute.xlu0 %1015
          %v1033 = vadd.f32 %v935, %v986
          %v1034 = vadd.f32 %v936, %v988
          %v1035 = vadd.f32 %v937, %v990
          %v1036 = vadd.f32 %v938, %v992
          %v1037 = vadd.f32 %v939, %v994
          %v1038 = vadd.f32 %v940, %v996
          %v1039 = vadd.f32 %v941, %v998
          %v1040 = vadd.f32 %v942, %v1000
          %v1041 = vadd.f32 %v943, %v1002
          %v1042 = vadd.f32 %v944, %v1004
          %v1043 = vadd.f32 %v945, %v1006
          %v1044 = vadd.f32 %v946, %v1008
          %v1045 = vadd.f32 %v947, %v1010
          %v1046 = vadd.f32 %v948, %v1012
          %v1047 = vadd.f32 %v949, %v1014
          %v1048 = vadd.f32 %v950, %v1016
          %v1049 = vmax.f32 %v1033, 0.0
          %v1050 = vmax.f32 %v1034, 0.0
          %v1051 = vmax.f32 %v1035, 0.0
          %v1052 = vmax.f32 %v1036, 0.0
          %v1053 = vmax.f32 %v1037, 0.0
          %v1054 = vmax.f32 %v1038, 0.0
          %v1055 = vmax.f32 %v1039, 0.0
          %v1056 = vmax.f32 %v1040, 0.0
          %v1057 = vmax.f32 %v1041, 0.0
          %v1058 = vmax.f32 %v1042, 0.0
          %v1059 = vmax.f32 %v1043, 0.0
          %v1060 = vmax.f32 %v1044, 0.0
          %v1061 = vmax.f32 %v1045, 0.0
          %v1062 = vmax.f32 %v1046, 0.0
          %v1063 = vmax.f32 %v1047, 0.0
          %v1064 = vmax.f32 %v1048, 0.0
          %1081 = vrot.lane.b32.xlu0 %v1049, 127
          %v1082 = vpop.permute.xlu0 %1081
          %1083 = vrot.lane.b32.xlu0 %v1050, 127
          %v1084 = vpop.permute.xlu0 %1083
          %1085 = vrot.lane.b32.xlu0 %v1051, 127
          %v1086 = vpop.permute.xlu0 %1085
          %1087 = vrot.lane.b32.xlu0 %v1052, 127
          %v1088 = vpop.permute.xlu0 %1087
          %1089 = vrot.lane.b32.xlu0 %v1053, 127
          %v1090 = vpop.permute.xlu0 %1089
          %1091 = vrot.lane.b32.xlu0 %v1054, 127
          %v1092 = vpop.permute.xlu0 %1091
          %1093 = vrot.lane.b32.xlu0 %v1055, 127
          %v1094 = vpop.permute.xlu0 %1093
          %1095 = vrot.lane.b32.xlu0 %v1056, 127
          %v1096 = vpop.permute.xlu0 %1095
          %1097 = vrot.lane.b32.xlu0 %v1057, 127
          %v1098 = vpop.permute.xlu0 %1097
          %1099 = vrot.lane.b32.xlu0 %v1058, 127
          %v1100 = vpop.permute.xlu0 %1099
          %1101 = vrot.lane.b32.xlu0 %v1059, 127
          %v1102 = vpop.permute.xlu0 %1101
          %1103 = vrot.lane.b32.xlu0 %v1060, 127
          %v1104 = vpop.permute.xlu0 %1103
          %1105 = vrot.lane.b32.xlu0 %v1061, 127
          %v1106 = vpop.permute.xlu0 %1105
          %1107 = vrot.lane.b32.xlu0 %v1062, 127
          %v1108 = vpop.permute.xlu0 %1107
          %1109 = vrot.lane.b32.xlu0 %v1063, 127
          %v1110 = vpop.permute.xlu0 %1109
          %1111 = vrot.lane.b32.xlu0 %v1064, 127
          %v1112 = vpop.permute.xlu0 %1111
          %v1129 = vmax.f32 %v1049, %v1082
          %v1130 = vmax.f32 %v1050, %v1084
          %v1131 = vmax.f32 %v1051, %v1086
          %v1132 = vmax.f32 %v1052, %v1088
          %v1133 = vmax.f32 %v1053, %v1090
          %v1134 = vmax.f32 %v1054, %v1092
          %v1135 = vmax.f32 %v1055, %v1094
          %v1136 = vmax.f32 %v1056, %v1096
          %v1137 = vmax.f32 %v1057, %v1098
          %v1138 = vmax.f32 %v1058, %v1100
          %v1139 = vmax.f32 %v1059, %v1102
          %v1140 = vmax.f32 %v1060, %v1104
          %v1141 = vmax.f32 %v1061, %v1106
          %v1142 = vmax.f32 %v1062, %v1108
          %v1143 = vmax.f32 %v1063, %v1110
          %v1144 = vmax.f32 %v1064, %v1112
          %1161 = vrot.lane.b32.xlu0 %v1129, 117
          %v1162 = vpop.permute.xlu0 %1161
          %1163 = vrot.lane.b32.xlu0 %v1130, 117
          %v1164 = vpop.permute.xlu0 %1163
          %1165 = vrot.lane.b32.xlu0 %v1131, 117
          %v1166 = vpop.permute.xlu0 %1165
          %1167 = vrot.lane.b32.xlu0 %v1132, 117
          %v1168 = vpop.permute.xlu0 %1167
          %1169 = vrot.lane.b32.xlu0 %v1133, 117
          %v1170 = vpop.permute.xlu0 %1169
          %1171 = vrot.lane.b32.xlu0 %v1134, 117
          %v1172 = vpop.permute.xlu0 %1171
          %1173 = vrot.lane.b32.xlu0 %v1135, 117
          %v1174 = vpop.permute.xlu0 %1173
          %1175 = vrot.lane.b32.xlu0 %v1136, 117
          %v1176 = vpop.permute.xlu0 %1175
          %1177 = vrot.lane.b32.xlu0 %v1137, 117
          %v1178 = vpop.permute.xlu0 %1177
          %1179 = vrot.lane.b32.xlu0 %v1138, 117
          %v1180 = vpop.permute.xlu0 %1179
          %1181 = vrot.lane.b32.xlu0 %v1139, 117
          %v1182 = vpop.permute.xlu0 %1181
          %1183 = vrot.lane.b32.xlu0 %v1140, 117
          %v1184 = vpop.permute.xlu0 %1183
          %1185 = vrot.lane.b32.xlu0 %v1141, 117
          %v1186 = vpop.permute.xlu0 %1185
          %1187 = vrot.lane.b32.xlu0 %v1142, 117
          %v1188 = vpop.permute.xlu0 %1187
          %1189 = vrot.lane.b32.xlu0 %v1143, 117
          %v1190 = vpop.permute.xlu0 %1189
          %1191 = vrot.lane.b32.xlu0 %v1144, 117
          %v1192 = vpop.permute.xlu0 %1191
          %v1209 = vmax.f32 %v1129, %v1162
          %v1210 = vmax.f32 %v1130, %v1164
          %v1211 = vmax.f32 %v1131, %v1166
          %v1212 = vmax.f32 %v1132, %v1168
          %v1213 = vmax.f32 %v1133, %v1170
          %v1214 = vmax.f32 %v1134, %v1172
          %v1215 = vmax.f32 %v1135, %v1174
          %v1216 = vmax.f32 %v1136, %v1176
          %v1217 = vmax.f32 %v1137, %v1178
          %v1218 = vmax.f32 %v1138, %v1180
          %v1219 = vmax.f32 %v1139, %v1182
          %v1220 = vmax.f32 %v1140, %v1184
          %v1221 = vmax.f32 %v1141, %v1186
          %v1222 = vmax.f32 %v1142, %v1188
          %v1223 = vmax.f32 %v1143, %v1190
          %v1224 = vmax.f32 %v1144, %v1192
          %v1225 = vlaneseq
          %v1226 = vshrl.u32 %v1225, 7
          %v1227 = vsub.s32 0, %v1226
          %v1228 = vrot.slane %v188, %v1227
          %v1229 = vmul.f32 %v1209, %v1228
          %v1230 = vmul.f32 %v1210, %v1228
          %v1231 = vmul.f32 %v1211, %v1228
          %v1232 = vmul.f32 %v1212, %v1228
          %v1233 = vmul.f32 %v1213, %v1228
          %v1234 = vmul.f32 %v1214, %v1228
          %v1235 = vmul.f32 %v1215, %v1228
          %v1236 = vmul.f32 %v1216, %v1228
          %v1237 = vmul.f32 %v1217, %v1228
          %v1238 = vmul.f32 %v1218, %v1228
          %v1239 = vmul.f32 %v1219, %v1228
          %v1240 = vmul.f32 %v1220, %v1228
          %v1241 = vmul.f32 %v1221, %v1228
          %v1242 = vmul.f32 %v1222, %v1228
          %v1243 = vmul.f32 %v1223, %v1228
          %v1244 = vmul.f32 %v1224, %v1228
          %vm1245 = vcmask 596992
          %v1246 = vsel %vm1245, %v1229, 0.0
          %1247 = vadd.xlane.f32.xlu0 %v1246
          %v1248 = vpop.xlane.xlu0 %1247
          %v1249 = vsel %vm1245, %v1230, 0.0
          %1250 = vadd.xlane.f32.xlu0 %v1249
          %v1251 = vpop.xlane.xlu0 %1250
          %v1252 = vsel %vm1245, %v1231, 0.0
          %1253 = vadd.xlane.f32.xlu0 %v1252
          %v1254 = vpop.xlane.xlu0 %1253
          %v1255 = vsel %vm1245, %v1232, 0.0
          %1256 = vadd.xlane.f32.xlu0 %v1255
          %v1257 = vpop.xlane.xlu0 %1256
          %v1258 = vsel %vm1245, %v1233, 0.0
          %1259 = vadd.xlane.f32.xlu0 %v1258
          %v1260 = vpop.xlane.xlu0 %1259
          %v1261 = vsel %vm1245, %v1234, 0.0
          %1262 = vadd.xlane.f32.xlu0 %v1261
          %v1263 = vpop.xlane.xlu0 %1262
          %v1264 = vsel %vm1245, %v1235, 0.0
          %1265 = vadd.xlane.f32.xlu0 %v1264
          %v1266 = vpop.xlane.xlu0 %1265
          %v1267 = vsel %vm1245, %v1236, 0.0
          %1268 = vadd.xlane.f32.xlu0 %v1267
          %v1269 = vpop.xlane.xlu0 %1268
          %v1270 = vsel %vm1245, %v1237, 0.0
          %1271 = vadd.xlane.f32.xlu0 %v1270
          %v1272 = vpop.xlane.xlu0 %1271
          %v1273 = vsel %vm1245, %v1238, 0.0
          %1274 = vadd.xlane.f32.xlu0 %v1273
          %v1275 = vpop.xlane.xlu0 %1274
          %v1276 = vsel %vm1245, %v1239, 0.0
          %1277 = vadd.xlane.f32.xlu0 %v1276
          %v1278 = vpop.xlane.xlu0 %1277
          %v1279 = vsel %vm1245, %v1240, 0.0
          %1280 = vadd.xlane.f32.xlu0 %v1279
          %v1281 = vpop.xlane.xlu0 %1280
          %v1282 = vsel %vm1245, %v1241, 0.0
          %1283 = vadd.xlane.f32.xlu0 %v1282
          %v1284 = vpop.xlane.xlu0 %1283
          %v1285 = vsel %vm1245, %v1242, 0.0
          %1286 = vadd.xlane.f32.xlu0 %v1285
          %v1287 = vpop.xlane.xlu0 %1286
          %v1288 = vsel %vm1245, %v1243, 0.0
          %1289 = vadd.xlane.f32.xlu0 %v1288
          %v1290 = vpop.xlane.xlu0 %1289
          %v1291 = vsel %vm1245, %v1244, 0.0
          %1292 = vadd.xlane.f32.xlu0 %v1291
          %v1293 = vpop.xlane.xlu0 %1292
          %s1294 = sld [smem:[#allocation2 + $0xa]]
          %v1295 = vstv %s1294
          %v1296 = vadd.f32 %v1248, %v1295
          %v1297 = vadd.f32 %v1251, %v1295
          %v1298 = vadd.f32 %v1254, %v1295
          %v1299 = vadd.f32 %v1257, %v1295
          %v1300 = vadd.f32 %v1260, %v1295
          %v1301 = vadd.f32 %v1263, %v1295
          %v1302 = vadd.f32 %v1266, %v1295
          %v1303 = vadd.f32 %v1269, %v1295
          %v1304 = vadd.f32 %v1272, %v1295
          %v1305 = vadd.f32 %v1275, %v1295
          %v1306 = vadd.f32 %v1278, %v1295
          %v1307 = vadd.f32 %v1281, %v1295
          %v1308 = vadd.f32 %v1284, %v1295
          %v1309 = vadd.f32 %v1287, %v1295
          %v1310 = vadd.f32 %v1290, %v1295
          %v1311 = vadd.f32 %v1293, %v1295
          %v1312 = vlaneseq
          %v1313 = vshrl.u32 %v1312, 7
          %v1314 = vsub.s32 1, %v1313
          %v1315 = vrot.slane %v188, %v1314
          %v1316 = vmul.f32 %v1209, %v1315
          %v1317 = vmul.f32 %v1210, %v1315
          %v1318 = vmul.f32 %v1211, %v1315
          %v1319 = vmul.f32 %v1212, %v1315
          %v1320 = vmul.f32 %v1213, %v1315
          %v1321 = vmul.f32 %v1214, %v1315
          %v1322 = vmul.f32 %v1215, %v1315
          %v1323 = vmul.f32 %v1216, %v1315
          %v1324 = vmul.f32 %v1217, %v1315
          %v1325 = vmul.f32 %v1218, %v1315
          %v1326 = vmul.f32 %v1219, %v1315
          %v1327 = vmul.f32 %v1220, %v1315
          %v1328 = vmul.f32 %v1221, %v1315
          %v1329 = vmul.f32 %v1222, %v1315
          %v1330 = vmul.f32 %v1223, %v1315
          %v1331 = vmul.f32 %v1224, %v1315
          %v1332 = vsel %vm1245, %v1316, 0.0
          %1333 = vadd.xlane.f32.xlu0 %v1332
          %v1334 = vpop.xlane.xlu0 %1333
          %v1335 = vsel %vm1245, %v1317, 0.0
          %1336 = vadd.xlane.f32.xlu0 %v1335
          %v1337 = vpop.xlane.xlu0 %1336
          %v1338 = vsel %vm1245, %v1318, 0.0
          %1339 = vadd.xlane.f32.xlu0 %v1338
          %v1340 = vpop.xlane.xlu0 %1339
          %v1341 = vsel %vm1245, %v1319, 0.0
          %1342 = vadd.xlane.f32.xlu0 %v1341
          %v1343 = vpop.xlane.xlu0 %1342
          %v1344 = vsel %vm1245, %v1320, 0.0
          %1345 = vadd.xlane.f32.xlu0 %v1344
          %v1346 = vpop.xlane.xlu0 %1345
          %v1347 = vsel %vm1245, %v1321, 0.0
          %1348 = vadd.xlane.f32.xlu0 %v1347
          %v1349 = vpop.xlane.xlu0 %1348
          %v1350 = vsel %vm1245, %v1322, 0.0
          %1351 = vadd.xlane.f32.xlu0 %v1350
          %v1352 = vpop.xlane.xlu0 %1351
          %v1353 = vsel %vm1245, %v1323, 0.0
          %1354 = vadd.xlane.f32.xlu0 %v1353
          %v1355 = vpop.xlane.xlu0 %1354
          %v1356 = vsel %vm1245, %v1324, 0.0
          %1357 = vadd.xlane.f32.xlu0 %v1356
          %v1358 = vpop.xlane.xlu0 %1357
          %v1359 = vsel %vm1245, %v1325, 0.0
          %1360 = vadd.xlane.f32.xlu0 %v1359
          %v1361 = vpop.xlane.xlu0 %1360
          %v1362 = vsel %vm1245, %v1326, 0.0
          %1363 = vadd.xlane.f32.xlu0 %v1362
          %v1364 = vpop.xlane.xlu0 %1363
          %v1365 = vsel %vm1245, %v1327, 0.0
          %1366 = vadd.xlane.f32.xlu0 %v1365
          %v1367 = vpop.xlane.xlu0 %1366
          %v1368 = vsel %vm1245, %v1328, 0.0
          %1369 = vadd.xlane.f32.xlu0 %v1368
          %v1370 = vpop.xlane.xlu0 %1369
          %v1371 = vsel %vm1245, %v1329, 0.0
          %1372 = vadd.xlane.f32.xlu0 %v1371
          %v1373 = vpop.xlane.xlu0 %1372
          %v1374 = vsel %vm1245, %v1330, 0.0
          %1375 = vadd.xlane.f32.xlu0 %v1374
          %v1376 = vpop.xlane.xlu0 %1375
          %v1377 = vsel %vm1245, %v1331, 0.0
          %1378 = vadd.xlane.f32.xlu0 %v1377
          %v1379 = vpop.xlane.xlu0 %1378
          %s1380 = sld [smem:[#allocation2 + $0xb]]
          %v1381 = vstv %s1380
          %v1382 = vadd.f32 %v1334, %v1381
          %v1383 = vadd.f32 %v1337, %v1381
          %v1384 = vadd.f32 %v1340, %v1381
          %v1385 = vadd.f32 %v1343, %v1381
          %v1386 = vadd.f32 %v1346, %v1381
          %v1387 = vadd.f32 %v1349, %v1381
          %v1388 = vadd.f32 %v1352, %v1381
          %v1389 = vadd.f32 %v1355, %v1381
          %v1390 = vadd.f32 %v1358, %v1381
          %v1391 = vadd.f32 %v1361, %v1381
          %v1392 = vadd.f32 %v1364, %v1381
          %v1393 = vadd.f32 %v1367, %v1381
          %v1394 = vadd.f32 %v1370, %v1381
          %v1395 = vadd.f32 %v1373, %v1381
          %v1396 = vadd.f32 %v1376, %v1381
          %v1397 = vadd.f32 %v1379, %v1381
          %vm1398 = vcmask 7168
          %v1399 = vsel %vm1398, %v1296, %v1382
          %v1400 = vsel %vm1398, %v1297, %v1383
          %v1401 = vsel %vm1398, %v1298, %v1384
          %v1402 = vsel %vm1398, %v1299, %v1385
          %v1403 = vsel %vm1398, %v1300, %v1386
          %v1404 = vsel %vm1398, %v1301, %v1387
          %v1405 = vsel %vm1398, %v1302, %v1388
          %v1406 = vsel %vm1398, %v1303, %v1389
          %v1407 = vsel %vm1398, %v1304, %v1390
          %v1408 = vsel %vm1398, %v1305, %v1391
          %v1409 = vsel %vm1398, %v1306, %v1392
          %v1410 = vsel %vm1398, %v1307, %v1393
          %v1411 = vsel %vm1398, %v1308, %v1394
          %v1412 = vsel %vm1398, %v1309, %v1395
          %v1413 = vsel %vm1398, %v1310, %v1396
          %v1414 = vsel %vm1398, %v1311, %v1397
          %s1415 = scalar_lea.vmem %s186, %s195
          %vm1416 = vcmask 15360
          %1417 = vst.msk [vmem:[%s1415] sm:$0xff] %vm1416, %v1399
          %1418 = vst.msk [vmem:[%s1415 + $0x8] sm:$0xff] %vm1416, %v1400
          %1419 = vst.msk [vmem:[%s1415 + $0x10] sm:$0xff] %vm1416, %v1401
          %1420 = vst.msk [vmem:[%s1415 + $0x18] sm:$0xff] %vm1416, %v1402
          %1421 = vst.msk [vmem:[%s1415 + $0x20] sm:$0xff] %vm1416, %v1403
          %1422 = vst.msk [vmem:[%s1415 + $0x28] sm:$0xff] %vm1416, %v1404
          %1423 = vst.msk [vmem:[%s1415 + $0x30] sm:$0xff] %vm1416, %v1405
          %1424 = vst.msk [vmem:[%s1415 + $0x38] sm:$0xff] %vm1416, %v1406
          %1425 = vst.msk [vmem:[%s1415 + $0x40] sm:$0xff] %vm1416, %v1407
          %1426 = vst.msk [vmem:[%s1415 + $0x48] sm:$0xff] %vm1416, %v1408
          %1427 = vst.msk [vmem:[%s1415 + $0x50] sm:$0xff] %vm1416, %v1409
          %1428 = vst.msk [vmem:[%s1415 + $0x58] sm:$0xff] %vm1416, %v1410
          %1429 = vst.msk [vmem:[%s1415 + $0x60] sm:$0xff] %vm1416, %v1411
          %1430 = vst.msk [vmem:[%s1415 + $0x68] sm:$0xff] %vm1416, %v1412
          %1431 = vst.msk [vmem:[%s1415 + $0x70] sm:$0xff] %vm1416, %v1413
          %1432 = vst.msk [vmem:[%s1415 + $0x78] sm:$0xff] %vm1416, %v1414
        $region41: #{cnn_forward.1} parent=31 // loop_footer
          %s194 = sadd.s32 1, %s190
        $region42: #{cnn_forward.1} parent=31 // loop_footer_branch
          %189 = sbr.rel target = $region38
        $region43: #{cnn_forward.1} parent=31 // loop_exit
          _
        %s1433 = smul.u32 128, %s15
        %p1434 = scmp.lt.s32.totalorder %s1433, 255
        %s1435 = scalar_select %p1434, %s1433, 255
        %s1436 = smul.addr %s1435, 8
        %s1437 = scalar_lea.vmem %s3, %s1436
        // Predicated region
        $region44: #{cnn_forward.1} parent=31 // pred_check
          %p1438 = pneg %p101
        $region45: #{cnn_forward.1} parent=31 // pred_check_branch
          %1440 = sbr.rel (%p1438) target = $region47
        $region46: #{cnn_forward.1} parent=31 // pred_region
          %s1441 = smul.u32 128, %s15
        $region47: #{cnn_forward.1} parent=31 // pred_fallthru
          _
      $region32: #{cnn_forward.1} parent=5 // pred_fallthru
        _
      %p1442 = scmp.le.s32.totalorder 2, %s10
      // Predicated region
      $region48: #{cnn_forward.1} parent=5 // pred_check
        %p1443 = pneg %p1442
      $region49: #{cnn_forward.1} parent=5 // pred_check_branch
        %1445 = sbr.rel (%p1443) target = $region51
      $region50: #{cnn_forward.1} parent=5 // pred_region
        %s1446 = ssub.s32 %s10, 2
        // Predicated region
        $region52: #{cnn_forward.1} parent=50 // pred_check
          %p1447 = pneg %p107
        $region53: #{cnn_forward.1} parent=50 // pred_check_branch
          %1449 = sbr.rel (%p1447) target = $region55
        $region54: #{cnn_forward.1} parent=50 // pred_region
          %s1450 = smul.u32 128, %s16
          %p1451 = scmp.lt.s32.totalorder %s1450, 255
          %s1452 = scalar_select %p1451, %s1450, 255
          %s1453 = smul.addr %s1452, 8
          %s1454 = scalar_lea.vmem %s3, %s1453
        $region55: #{cnn_forward.1} parent=50 // pred_fallthru
          _
      $region51: #{cnn_forward.1} parent=5 // pred_fallthru
        _
    $region6: #{cnn_forward.1} parent=1 // loop_footer
      %s14 = sadd.s32 1, %s10
    $region7: #{cnn_forward.1} parent=1 // loop_footer_branch
      %9 = sbr.rel target = $region3
    $region8: #{cnn_forward.1} parent=1 // loop_exit
      _
    %1455 = vsyncpa [#allocation3], 1
    %s1456 = scalar_lea.sflag [#allocation3], 1
    %1457 = vsyncpa %s1456, 1

</llo_original>
